<compile_context>
chip_gen: v7x
topology: tpu7x:2x2x1
jax: 0.10.0
libtpu: 0.0.40
codegen_flags: <defaults>
</compile_context>

<pallas_src>
import functools
import math

import jax
import jax.numpy as jnp
from jax.experimental import pallas as pl
from jax.experimental.pallas import tpu as pltpu

SH_C0 = 0.28209479177387814  # rgb_to_sh constant


# ----------------------------------------------------------------------------
# Pallas kernel: one grid step processes tile_n anchors.
#   x_ref   : [TN, W]   packed per-anchor slab (bf16 or f32)
#   w1_ref  : [W,  HIDp] fused first layer for all 4 MLPs (b1 folded via 1-lane)
#   w2_ref  : [HIDp, W]  block-diagonal fused second layer
#   b2_ref  : [1,  W]    fused second-layer bias (f32)
#   out_ref : [TN, W]    lane-dense slab: scales(3K)|quats(4K)|opac(K)|sh0(3K)|pad
# ----------------------------------------------------------------------------
def scaffold_kernel(x_ref, w1_ref, w2_ref, b2_ref, out_ref, *, K):
    x = x_ref[...]                                               # [TN, W]

    # Fused first layer (scales|quats|opac|colors side by side). ob_view rows
    # and the b1 row are stacked inside W1; non-feature lanes have zero rows.
    h = jnp.dot(x, w1_ref[...], preferred_element_type=jnp.float32)
    h = jnp.maximum(h, 0.0).astype(w2_ref.dtype)                 # ReLU

    # Fused block-diagonal second layer -> one lane-dense raw slab (f32).
    raw = jnp.dot(h, w2_ref[...], preferred_element_type=jnp.float32) + b2_ref[...]

    # Full-width, in-lane masked epilogue. The input slab is lane-aligned with
    # the output: lanes 0:3K hold scale_extend, lanes 7K:8K hold 1/decay.
    W = out_ref.shape[-1]
    dyn = x.astype(jnp.float32)                                  # dynamic per-lane operand
    lane = jax.lax.broadcasted_iota(jnp.int32, (1, W), 1)
    is_scale = lane < 3 * K
    is_quat = (lane >= 3 * K) & (lane < 7 * K)
    is_opac = (lane >= 7 * K) & (lane < 8 * K)
    is_sh0 = (lane >= 8 * K) & (lane < 11 * K)

    inv_sh = jnp.float32(1.0 / SH_C0)
    sig = jax.nn.sigmoid(raw)                                    # EUP, full width
    sig_out = sig * jnp.where(is_scale, dyn, inv_sh) \
        + jnp.where(is_scale, 0.0, -0.5 * inv_sh)                # scales / sh0 lanes
    opac_out = 1.0 - jnp.exp(-jnp.exp(raw) * dyn)                # opacity lanes

    out = jnp.where(is_scale | is_sh0, sig_out,
                    jnp.where(is_opac, opac_out,
                              jnp.where(is_quat, raw, 0.0)))
    out_ref[...] = out                                           # single full-width store


# ----------------------------------------------------------------------------
# Wrapper: DecafPipeline.forward
# ----------------------------------------------------------------------------
def decaf_pipeline_forward(params, cam_t, frame, *, frame_base=0, frame_length=8,
                           tile_n=2048, use_bf16=True):
    # --- Deformable.forward: range-check the frame and hand out anchors ---
    frame = frame - frame_base
    if isinstance(frame, int):            # skip assert when traced under jit
        assert frame < frame_length, "frame out of range"

    feat = params["anchor_embed"].astype(jnp.float32)               # [N, F]
    axyz = params["anchor_xyz"].astype(jnp.float32)                 # [N, 3]
    offsets = params["anchor_offsets"].astype(jnp.float32)          # [N, K, 3]
    offext = params["anchor_offset_extend"].astype(jnp.float32)     # [N, 3]
    scext = params["anchor_scale_extend"].astype(jnp.float32)       # [N, 3]
    odecay = params["anchor_opacity_decay"].astype(jnp.float32)     # [N]

    N, F = feat.shape
    K = offsets.shape[1]
    H = params["mlp_scales"]["w1"].shape[1]
    HID = 4 * H
    HIDp = -(-HID // 128) * 128

    # --- means path: pure elementwise, no MLP -> stays in XLA, off the kernel ---
    # TODO(synk): Anchors.childs_xyz definition was not provided; using the
    # scaffold-gs convention anchor_xyz + offsets * exp(offset_extend).
    means = (axyz[:, None, :] + offsets * jnp.exp(offext)[:, None, :]).reshape(-1, 3)

    # --- per-anchor quantities entering the kernel ---
    # NOTE: if cam_t coincides exactly with an anchor this divides by zero
    # (matches the PyTorch reference; no eps to keep semantics identical).
    ob = cam_t.reshape(1, 3).astype(jnp.float32) - axyz
    ob = ob / jnp.sqrt(jnp.sum(ob * ob, axis=-1, keepdims=True))
    eps = jnp.float32(jnp.finfo(jnp.float32).eps)
    inv_dec = 1.0 / jnp.maximum(odecay, eps)                         # [N]

    # --- one packed, lane-dense slab [N, W]; W also the output width ---
    off_feat = 8 * K
    off_ob = off_feat + F
    off_one = off_ob + 3
    W = -(-max(11 * K, off_one + 1) // 128) * 128

    x = jnp.zeros((N, W), jnp.float32)
    x = x.at[:, 0:3 * K].set(jnp.tile(scext, (1, K)))                # aligned w/ scales lanes
    x = x.at[:, 7 * K:8 * K].set(jnp.repeat(inv_dec[:, None], K, axis=1))  # aligned w/ opac
    x = x.at[:, off_feat:off_feat + F].set(feat)
    x = x.at[:, off_ob:off_ob + 3].set(ob)
    x = x.at[:, off_one].set(1.0)                                    # bias lane

    # --- fused, lane-dense weight slabs ---
    ps, pq, po, pc = (params["mlp_scales"], params["mlp_quats"],
                      params["mlp_opacities"], params["mlp_colors"])
    w1 = jnp.zeros((W, HIDp), jnp.float32)
    w1 = w1.at[off_feat:off_feat + F, 0:HID].set(
        jnp.concatenate([ps["w1"], pq["w1"], po["w1"], pc["w1"][:F]], axis=1))
    w1 = w1.at[off_ob:off_ob + 3, 3 * H:4 * H].set(pc["w1"][F:F + 3])
    w1 = w1.at[off_one, 0:HID].set(
        jnp.concatenate([ps["b1"], pq["b1"], po["b1"], pc["b1"]], axis=1)[0])

    w2 = jnp.zeros((HIDp, W), jnp.float32)
    w2 = w2.at[0 * H:1 * H, 0:3 * K].set(ps["w2"])
    w2 = w2.at[1 * H:2 * H, 3 * K:7 * K].set(pq["w2"])
    w2 = w2.at[2 * H:3 * H, 7 * K:8 * K].set(po["w2"])
    w2 = w2.at[3 * H:4 * H, 8 * K:11 * K].set(pc["w2"])

    b2 = jnp.zeros((1, W), jnp.float32)
    b2 = (b2.at[:, 0:3 * K].set(ps["b2"])
            .at[:, 3 * K:7 * K].set(pq["b2"])
            .at[:, 7 * K:8 * K].set(po["b2"])
            .at[:, 8 * K:11 * K].set(pc["b2"]))

    # --- bf16 matmul operands (f32 accumulation / epilogue / outputs) ---
    mm_dtype = jnp.bfloat16 if use_bf16 else jnp.float32
    x = x.astype(mm_dtype)
    w1 = w1.astype(mm_dtype)
    w2 = w2.astype(mm_dtype)

    # --- tiling: clamp so we get >=2 grid steps (v7x megacore), pad N ---
    tile_n = max(8, (int(tile_n) // 8) * 8)
    tile_n = min(tile_n, max(8, (((N + 1) // 2) + 7) // 8 * 8))
    n_tiles = pl.cdiv(N, tile_n)
    Np = n_tiles * tile_n
    x_p = jnp.pad(x, ((0, Np - N), (0, 0))) if Np != N else x

    elt = 2 if use_bf16 else 4
    vmem_bytes = (2 * tile_n * W * elt          # double-buffered input slab
                  + 2 * tile_n * W * 4          # double-buffered output slab
                  + 2 * W * HIDp * elt + W * 4  # weights + bias
                  + (4 << 20))                  # headroom
    vmem_limit = int(min(64 << 20, max(vmem_bytes, 32 << 20)))

    grid_spec = pltpu.PrefetchScalarGridSpec(
        num_scalar_prefetch=0,
        grid=(n_tiles,),
        in_specs=[
            pl.BlockSpec((tile_n, W), lambda i: (i, 0)),     # packed anchor slab
            pl.BlockSpec(w1.shape, lambda i: (0, 0)),        # fused W1 (+b1 row)
            pl.BlockSpec(w2.shape, lambda i: (0, 0)),        # block-diagonal W2
            pl.BlockSpec(b2.shape, lambda i: (0, 0)),        # fused b2
        ],
        out_specs=pl.BlockSpec((tile_n, W), lambda i: (i, 0)),
    )

    out = pl.pallas_call(
        functools.partial(scaffold_kernel, K=K),
        out_shape=jax.ShapeDtypeStruct((Np, W), jnp.float32),
        grid_spec=grid_spec,
        compiler_params=pltpu.CompilerParams(
            dimension_semantics=("parallel",),
            vmem_limit_bytes=vmem_limit),
    )(x_p, w1, w2, b2)

    out = out[:N]
    NK = N * K
    gs = {
        "means": means,
        "scales": out[:, 0:3 * K].reshape(NK, 3),
        "quats": out[:, 3 * K:7 * K].reshape(NK, 4),   # unnormalized, like the reference
        "opacities": out[:, 7 * K:8 * K].reshape(NK),
        "sh0": out[:, 8 * K:11 * K].reshape(NK, 1, 3),
        "shN": jnp.zeros((NK, 0, 3), jnp.float32),     # sh_degree == 0
    }
    return gs


# ----------------------------------------------------------------------------
# Pure-JAX reference (mirrors the PyTorch forward) for correctness checks.
# ----------------------------------------------------------------------------
def reference_forward(params, cam_t):
    feat = params["anchor_embed"]
    axyz = params["anchor_xyz"]
    offsets = params["anchor_offsets"]
    offext = params["anchor_offset_extend"]
    scext = params["anchor_scale_extend"]
    odecay = params["anchor_opacity_decay"]
    N, K = offsets.shape[0], offsets.shape[1]

    ob = cam_t.reshape(1, 3) - axyz
    ob = ob / jnp.linalg.norm(ob, axis=-1, keepdims=True)
    fea_ob = jnp.concatenate([feat, ob], axis=-1)

    def mlp(x, p):
        return jnp.maximum(x @ p["w1"] + p["b1"], 0.0) @ p["w2"] + p["b2"]

    means = (axyz[:, None, :] + offsets * jnp.exp(offext)[:, None, :]).reshape(-1, 3)
    scales = jax.nn.sigmoid(mlp(feat, params["mlp_scales"])).reshape(N, K, 3)
    scales = (scales * scext[:, None, :]).reshape(-1, 3)
    quats = mlp(feat, params["mlp_quats"]).reshape(-1, 4)
    op = jnp.exp(mlp(feat, params["mlp_opacities"])).reshape(-1)
    dec = jnp.repeat(odecay, K)
    eps = jnp.finfo(jnp.float32).eps
    opacities = 1.0 - jnp.exp(-op / jnp.maximum(dec, eps))
    colors = jax.nn.sigmoid(mlp(fea_ob, params["mlp_colors"])).reshape(-1, 3)
    sh0 = ((colors - 0.5) / SH_C0)[:, None, :]
    return {"means": means, "scales": scales, "quats": quats,
            "opacities": opacities, "sh0": sh0,
            "shN": jnp.zeros((N * K, 0, 3), jnp.float32)}


# ----------------------------------------------------------------------------
# Deterministic parameter construction.
# NOTE: the real module zero-inits most anchor attrs; small random values are
# used instead so the kernel compute path is non-trivial.
# ----------------------------------------------------------------------------
def init_params(key, N, F, H, K, init_pts):
    keys = jax.random.split(key, 32)
    ki = iter(range(32))

    def nxt():
        return keys[next(ki)]

    def linear(key, fan_in, fan_out):
        k1, k2 = jax.random.split(key)
        bound = 1.0 / math.sqrt(fan_in)
        w = jax.random.uniform(k1, (fan_in, fan_out), jnp.float32, -bound, bound)
        b = jax.random.uniform(k2, (1, fan_out), jnp.float32, -bound, bound)
        return w, b

    def mlp_params(key, in_dim, out_dim):
        k1, k2 = jax.random.split(key)
        w1, b1 = linear(k1, in_dim, H)
        w2, b2 = linear(k2, H, out_dim)
        return {"w1": w1, "b1": b1, "w2": w2, "b2": b2}

    anchor_xyz = init_pts + (jax.random.normal(nxt(), (N, 3)) * 2.0 - 1.0) * 0.001
    params = {
        "anchor_embed": jax.random.normal(nxt(), (N, F)) * 0.1,
        "anchor_xyz": anchor_xyz.astype(jnp.float32),
        "anchor_offsets": jax.random.normal(nxt(), (N, K, 3)) * 0.05,
        "anchor_offset_extend": jax.random.normal(nxt(), (N, 3)) * 0.1,
        "anchor_scale_extend": jax.random.normal(nxt(), (N, 3)) * 0.1,
        "anchor_opacity_decay": jnp.ones((N,), jnp.float32),
        "mlp_scales": mlp_params(nxt(), F, 3 * K),      # skip_cam=True  -> F in
        "mlp_quats": mlp_params(nxt(), F, 4 * K),
        "mlp_opacities": mlp_params(nxt(), F, 1 * K),
        "mlp_colors": mlp_params(nxt(), F + 3, 3 * K),  # skip_cam=False -> F+3 in
    }
    return jax.tree.map(lambda a: a.astype(jnp.float32), params)


if __name__ == "__main__":
    key = jax.random.PRNGKey(0)
    N, F, H, K = 128, 32, 32, 4    # anchors, anchor_feature_dim, hidden_dim, children

    k_pts, k_par = jax.random.split(key)
    init_pts = jax.random.normal(k_pts, (N, 3), jnp.float32)
    params = init_params(k_par, N, F, H, K, init_pts)

    cam_t = jnp.array([0.5, -1.0, 2.0], jnp.float32)   # Camera.c2w_t
    frame = 0                                          # Camera.frame

    ref = reference_forward(params, cam_t)

    # f32 matmul path: tight correctness check.
    gs32 = decaf_pipeline_forward(params, cam_t, frame, use_bf16=False)
    gs32 = jax.block_until_ready(gs32)
    for name in ("means", "scales", "quats", "opacities", "sh0"):
        assert gs32[name].shape == ref[name].shape, name
        assert jnp.allclose(gs32[name], ref[name], atol=1e-3, rtol=1e-3), name

    # bf16 matmul path (default / production): relaxed tolerance.
    gs = decaf_pipeline_forward(params, cam_t, frame)
    gs = jax.block_until_ready(gs)
    for name in ("means", "scales", "quats", "opacities", "sh0"):
        assert gs[name].shape == ref[name].shape, name
        assert jnp.allclose(gs[name], ref[name], atol=1e-2, rtol=1e-2), name
    assert gs["shN"].shape == (N * K, 0, 3)

    print("KERNEL_OK")
</pallas_src>

<mosaic_0001>
module attributes {stable_mosaic.version = 11 : i64} {
  func.func @scaffold_kernel(%arg0: i32, %arg1: memref<64x128xf32, #tpu.memory_space<vmem>>, %arg2: memref<128x128xf32, #tpu.memory_space<vmem>>, %arg3: memref<128x128xf32, #tpu.memory_space<vmem>>, %arg4: memref<1x128xf32, #tpu.memory_space<vmem>>, %arg5: memref<64x128xf32, #tpu.memory_space<vmem>>) attributes {dimension_semantics = [#tpu.dimension_semantics<parallel>], iteration_bounds = array<i64: 2>, scalar_prefetch = 0 : i64, scratch_operands = 0 : i64, tpu.core_type = #tpu.core_type<tc>, window_params = [{transform_indices = @transform_0, window_bounds = array<i64: 64, 128>}, {pipeline_mode = #tpu.pipeline_mode<synchronous>, transform_indices = @transform_1, window_bounds = array<i64: 128, 128>}, {pipeline_mode = #tpu.pipeline_mode<synchronous>, transform_indices = @transform_2, window_bounds = array<i64: 128, 128>}, {pipeline_mode = #tpu.pipeline_mode<synchronous>, transform_indices = @transform_3, window_bounds = array<i64: 1, 128>}, {transform_indices = @transform_4, window_bounds = array<i64: 64, 128>}]} {
    %c0 = arith.constant 0 : index
    %c0_0 = arith.constant 0 : index
    %0 = vector.load %arg1[%c0, %c0_0] : memref<64x128xf32, #tpu.memory_space<vmem>>, vector<64x128xf32>
    %c0_1 = arith.constant 0 : index
    %c0_2 = arith.constant 0 : index
    %1 = vector.load %arg2[%c0_1, %c0_2] : memref<128x128xf32, #tpu.memory_space<vmem>>, vector<128x128xf32>
    %cst = arith.constant dense<0.000000e+00> : vector<64x128xf32>
    %2 = tpu.matmul %0, %1, %cst {dimension_numbers = #tpu.dot_dimension_numbers<[1], [0], [0], [1], [0, 0, 1, 1], [], []>} : vector<64x128xf32>, vector<128x128xf32>, vector<64x128xf32> -> vector<64x128xf32>
    %cst_3 = arith.constant 0.000000e+00 : f32
    %3 = vector.broadcast %cst_3 : f32 to vector<64x128xf32>
    %4 = arith.maximumf %2, %3 : vector<64x128xf32>
    %c0_4 = arith.constant 0 : index
    %c0_5 = arith.constant 0 : index
    %5 = vector.load %arg3[%c0_4, %c0_5] : memref<128x128xf32, #tpu.memory_space<vmem>>, vector<128x128xf32>
    %cst_6 = arith.constant dense<0.000000e+00> : vector<64x128xf32>
    %6 = tpu.matmul %4, %5, %cst_6 {dimension_numbers = #tpu.dot_dimension_numbers<[1], [0], [0], [1], [0, 0, 1, 1], [], []>} : vector<64x128xf32>, vector<128x128xf32>, vector<64x128xf32> -> vector<64x128xf32>
    %c0_7 = arith.constant 0 : index
    %c0_8 = arith.constant 0 : index
    %7 = vector.load %arg4[%c0_7, %c0_8] : memref<1x128xf32, #tpu.memory_space<vmem>>, vector<1x128xf32>
    %8 = vector.broadcast %7 : vector<1x128xf32> to vector<64x128xf32>
    %9 = arith.addf %6, %8 : vector<64x128xf32>
    %10 = tpu.iota {dimensions = array<i32: 1>} : vector<1x128xi32>
    %c12_i32 = arith.constant 12 : i32
    %11 = vector.broadcast %c12_i32 : i32 to vector<1x128xi32>
    %12 = arith.cmpi slt, %10, %11 : vector<1x128xi32>
    %c12_i32_9 = arith.constant 12 : i32
    %13 = vector.broadcast %c12_i32_9 : i32 to vector<1x128xi32>
    %14 = arith.cmpi sge, %10, %13 : vector<1x128xi32>
    %c28_i32 = arith.constant 28 : i32
    %15 = vector.broadcast %c28_i32 : i32 to vector<1x128xi32>
    %16 = arith.cmpi slt, %10, %15 : vector<1x128xi32>
    %17 = arith.andi %14, %16 : vector<1x128xi1>
    %c28_i32_10 = arith.constant 28 : i32
    %18 = vector.broadcast %c28_i32_10 : i32 to vector<1x128xi32>
    %19 = arith.cmpi sge, %10, %18 : vector<1x128xi32>
    %c32_i32 = arith.constant 32 : i32
    %20 = vector.broadcast %c32_i32 : i32 to vector<1x128xi32>
    %21 = arith.cmpi slt, %10, %20 : vector<1x128xi32>
    %22 = arith.andi %19, %21 : vector<1x128xi1>
    %c32_i32_11 = arith.constant 32 : i32
    %23 = vector.broadcast %c32_i32_11 : i32 to vector<1x128xi32>
    %24 = arith.cmpi sge, %10, %23 : vector<1x128xi32>
    %c44_i32 = arith.constant 44 : i32
    %25 = vector.broadcast %c44_i32 : i32 to vector<1x128xi32>
    %26 = arith.cmpi slt, %10, %25 : vector<1x128xi32>
    %27 = arith.andi %24, %26 : vector<1x128xi1>
    %28 = arith.negf %9 : vector<64x128xf32>
    %29 = math.exp %28 : vector<64x128xf32>
    %cst_12 = arith.constant 1.000000e+00 : f32
    %30 = vector.broadcast %cst_12 : f32 to vector<64x128xf32>
    %31 = arith.addf %30, %29 : vector<64x128xf32>
    %32 = arith.divf %30, %31 : vector<64x128xf32>
    %cst_13 = arith.constant 3.54490781 : f32
    %33 = vector.shape_cast %12 : vector<1x128xi1> to vector<1x128xi1>
    %34 = vector.broadcast %33 : vector<1x128xi1> to vector<64x128xi1>
    %35 = vector.broadcast %cst_13 : f32 to vector<64x128xf32>
    %36 = arith.select %34, %0, %35 : vector<64x128xi1>, vector<64x128xf32>
    %37 = arith.mulf %32, %36 : vector<64x128xf32>
    %cst_14 = arith.constant -5.000000e-01 : f32
    %cst_15 = arith.constant 3.54490781 : f32
    %38 = arith.mulf %cst_14, %cst_15 : f32
    %cst_16 = arith.constant 0.000000e+00 : f32
    %39 = vector.broadcast %cst_16 : f32 to vector<1x128xf32>
    %40 = vector.broadcast %38 : f32 to vector<1x128xf32>
    %41 = arith.select %12, %39, %40 : vector<1x128xi1>, vector<1x128xf32>
    %42 = vector.broadcast %41 : vector<1x128xf32> to vector<64x128xf32>
    %43 = arith.addf %37, %42 : vector<64x128xf32>
    %44 = math.exp %9 : vector<64x128xf32>
    %cst_17 = arith.constant 0.000000e+00 : f32
    %45 = vector.broadcast %cst_17 : f32 to vector<64x128xf32>
    %46 = arith.subf %45, %44 : vector<64x128xf32>
    %47 = arith.mulf %46, %0 : vector<64x128xf32>
    %48 = math.exp %47 : vector<64x128xf32>
    %cst_18 = arith.constant 1.000000e+00 : f32
    %49 = vector.broadcast %cst_18 : f32 to vector<64x128xf32>
    %50 = arith.subf %49, %48 : vector<64x128xf32>
    %51 = arith.ori %12, %27 : vector<1x128xi1>
    %cst_19 = arith.constant 0.000000e+00 : f32
    %52 = vector.shape_cast %17 : vector<1x128xi1> to vector<1x128xi1>
    %53 = vector.broadcast %52 : vector<1x128xi1> to vector<64x128xi1>
    %54 = vector.broadcast %cst_19 : f32 to vector<64x128xf32>
    %55 = arith.select %53, %9, %54 : vector<64x128xi1>, vector<64x128xf32>
    %56 = vector.shape_cast %22 : vector<1x128xi1> to vector<1x128xi1>
    %57 = vector.broadcast %56 : vector<1x128xi1> to vector<64x128xi1>
    %58 = arith.select %57, %50, %55 : vector<64x128xi1>, vector<64x128xf32>
    %59 = vector.shape_cast %51 : vector<1x128xi1> to vector<1x128xi1>
    %60 = vector.broadcast %59 : vector<1x128xi1> to vector<64x128xi1>
    %61 = arith.select %60, %43, %58 : vector<64x128xi1>, vector<64x128xf32>
    %c0_20 = arith.constant 0 : index
    %c0_21 = arith.constant 0 : index
    %62 = vector.load %arg5[%c0_20, %c0_21] : memref<64x128xf32, #tpu.memory_space<vmem>>, vector<64x128xf32>
    tpu.vector_store %arg5[%c0_20, %c0_21], %61 {strides = array<i32>} : memref<64x128xf32, #tpu.memory_space<vmem>>, vector<64x128xf32>,
    return
  }
  func.func @transform_0(%arg0: i32) -> (i32, i32) {
    %c0_i32 = arith.constant 0 : i32
    %c0_i32_0 = arith.constant 0 : i32
    return %arg0, %c0_i32 : i32, i32
  }
  func.func @transform_1(%arg0: i32) -> (i32, i32) {
    %c0_i32 = arith.constant 0 : i32
    %c0_i32_0 = arith.constant 0 : i32
    %c0_i32_1 = arith.constant 0 : i32
    return %c0_i32, %c0_i32_0 : i32, i32
  }
  func.func @transform_2(%arg0: i32) -> (i32, i32) {
    %c0_i32 = arith.constant 0 : i32
    %c0_i32_0 = arith.constant 0 : i32
    %c0_i32_1 = arith.constant 0 : i32
    return %c0_i32, %c0_i32_0 : i32, i32
  }
  func.func @transform_3(%arg0: i32) -> (i32, i32) {
    %c0_i32 = arith.constant 0 : i32
    %c0_i32_0 = arith.constant 0 : i32
    %c0_i32_1 = arith.constant 0 : i32
    return %c0_i32, %c0_i32_0 : i32, i32
  }
  func.func @transform_4(%arg0: i32) -> (i32, i32) {
    %c0_i32 = arith.constant 0 : i32
    %c0_i32_0 = arith.constant 0 : i32
    return %arg0, %c0_i32 : i32, i32
  }
}

</mosaic_0001>

<llo_original>
// kernel: tpu_custom_call.1
$region0: #{tpu_custom_call.1}
  #allocation0 [shape = 'u32[]', space=smem, size = 0x4, offset = 0x4, fixed_abs, tag = 'smem constant byte address 0x4 - core index']
  #allocation1 [shape = 'u32[144,128]{1,0:T(1,128)}', space=vmem, size = 0x12000, scoped, tag = 'internal scratch']
  %s0 = inlined_call_operand.hbm [shape: f32[128,128], index: 0, kind: input, shape index: {}]
  %s1 = inlined_call_operand.hbm [shape: f32[128,128], index: 1, kind: input, shape index: {}]
  %s2 = inlined_call_operand.hbm [shape: f32[128,128], index: 2, kind: input, shape index: {}]
  %s3 = inlined_call_operand.vmem [shape: f32[1,128], index: 3, kind: input, shape index: {}]
  %s4 = inlined_call_operand.hbm [shape: f32[128,128], index: 4, kind: output, shape index: {}]
  %s5 = sld [smem:[#allocation0]]
  $region61: #{tpu_custom_call.1} parent=0
    _
  %s7 = ssub.s32 1, %s5
  %s8 = scalar_select 0, %s7, %s5
  $region1: #{tpu_custom_call.1} parent=0
    #allocation2 [shape = 'u8[65536]{0}', space=vmem, size = 0x10000, scoped, tag = 'input window, operand 0']
    #allocation3 [shape = 's32[2]{0}', space=sflag, size = 0x8, scoped, tag = 'scoped memory for tpu_custom_call.1']
    #allocation4 [shape = 's32[2]{0}', space=sflag, size = 0x8, scoped, tag = 'scoped memory for tpu_custom_call.1']
    #allocation5 [shape = 'u8[65536]{0}', space=vmem, size = 0x10000, scoped, tag = 'input window, operand 1, single buffered']
    #allocation6 [shape = 's32[1]{0}', space=sflag, size = 0x4, scoped, tag = 'scoped memory for tpu_custom_call.1']
    #allocation7 [shape = 'u8[65536]{0}', space=vmem, size = 0x10000, scoped, tag = 'input window, operand 2, single buffered']
    #allocation8 [shape = 'u8[65536]{0}', space=vmem, size = 0x10000, scoped, tag = 'output window, operand 0']
    %9 = vsyncpa [#allocation3], 0
    %s10 = scalar_lea.sflag [#allocation3], 1
    %11 = vsyncpa %s10, 0
    %12 = vsyncpa [#allocation6], 0
    %13 = vsyncpa [#allocation4], 0
    %s14 = scalar_lea.sflag [#allocation4], 1
    %15 = vsyncpa %s14, 0
    loop: start=0, step=1, limit=4
    $region2: #{tpu_custom_call.1} parent=1 // loop_pre_header
      _
    $region3: #{tpu_custom_call.1} parent=1 // loop_header
      %s17 = sphi 0, %s21
      %p18 = scmp.ge.s32.totalorder %s17, 4
      %s27 = sphi 0, %s29
      %s30 = sphi 0, %s27
      %s31 = sphi 0, %s30
      %s47 = sphi 0, %s31
      %s51 = sphi 0, %s51
      %s53 = sphi 0, %s51
      %s54 = sphi 0, %s53
      %s68 = sphi 0, %s54
      %s72 = sphi 0, %s72
      %s74 = sphi 0, %s72
      %s75 = sphi 0, %s74
      %s89 = sphi 0, %s75
      %s93 = sphi 0, %s93
      %s95 = sphi 0, %s93
      %s96 = sphi 0, %s95
      %s110 = sphi 0, %s96
      %s116 = sphi 0, %s118
      %s119 = sphi 0, %s116
      %s120 = sphi 0, %s119
      %s136 = sphi 0, %s120
    $region4: #{tpu_custom_call.1} parent=1 // loop_header_branch
      %20 = sbr.rel (%p18) target = $region8
    $region5: #{tpu_custom_call.1} parent=1 // loop_body
      %s22 = ssub.s32 %s17, 1
      %s23 = ssub.s32 %s17, 2
      %s24 = sadd.s32 %s17, 1
      %s25 = ssub.s32 %s17, %s24
      %p26 = scmp.eq.s32.totalorder %s25, 0
      %s28 = sadd.s32 %s27, 1
      %s29 = scalar_select %p26, %s27, %s28
      %p32 = pneg %p26
      %p33 = scmp.eq.s32.totalorder %s17, 1
      %p34 = por %p32, %p33
      %p35 = scmp.ne.s32.totalorder %s27, %s30
      %p36 = scmp.eq.s32.totalorder %s17, 0
      %p37 = por %p35, %p36
      %p38 = scmp.ne.s32.totalorder %s27, %s30
      %p39 = scmp.eq.s32.totalorder %s22, 1
      %p40 = por %p38, %p39
      %p41 = scmp.ne.s32.totalorder %s30, %s31
      %p42 = scmp.eq.s32.totalorder %s22, 0
      %p43 = por %p41, %p42
      %p44 = scmp.ne.s32.totalorder %s30, %s31
      %p45 = scmp.eq.s32.totalorder %s23, 1
      %p46 = por %p44, %p45
      %p48 = scmp.ne.s32.totalorder %s31, %s47
      %p49 = scmp.eq.s32.totalorder %s23, 0
      %p50 = por %p48, %p49
      %s52 = sadd.s32 %s51, 1
      %p55 = scmp.eq.s32.totalorder %s17, 1
      %p56 = scmp.ne.s32.totalorder %s51, %s53
      %p57 = scmp.eq.s32.totalorder %s17, 0
      %p58 = por %p56, %p57
      %p59 = scmp.ne.s32.totalorder %s51, %s53
      %p60 = scmp.eq.s32.totalorder %s22, 1
      %p61 = por %p59, %p60
      %p62 = scmp.ne.s32.totalorder %s53, %s54
      %p63 = scmp.eq.s32.totalorder %s22, 0
      %p64 = por %p62, %p63
      %p65 = scmp.ne.s32.totalorder %s53, %s54
      %p66 = scmp.eq.s32.totalorder %s23, 1
      %p67 = por %p65, %p66
      %p69 = scmp.ne.s32.totalorder %s54, %s68
      %p70 = scmp.eq.s32.totalorder %s23, 0
      %p71 = por %p69, %p70
      %s73 = sadd.s32 %s72, 1
      %p76 = scmp.eq.s32.totalorder %s17, 1
      %p77 = scmp.ne.s32.totalorder %s72, %s74
      %p78 = scmp.eq.s32.totalorder %s17, 0
      %p79 = por %p77, %p78
      %p80 = scmp.ne.s32.totalorder %s72, %s74
      %p81 = scmp.eq.s32.totalorder %s22, 1
      %p82 = por %p80, %p81
      %p83 = scmp.ne.s32.totalorder %s74, %s75
      %p84 = scmp.eq.s32.totalorder %s22, 0
      %p85 = por %p83, %p84
      %p86 = scmp.ne.s32.totalorder %s74, %s75
      %p87 = scmp.eq.s32.totalorder %s23, 1
      %p88 = por %p86, %p87
      %p90 = scmp.ne.s32.totalorder %s75, %s89
      %p91 = scmp.eq.s32.totalorder %s23, 0
      %p92 = por %p90, %p91
      %s94 = sadd.s32 %s93, 1
      %p97 = scmp.eq.s32.totalorder %s17, 1
      %p98 = scmp.ne.s32.totalorder %s93, %s95
      %p99 = scmp.eq.s32.totalorder %s17, 0
      %p100 = por %p98, %p99
      %p101 = scmp.ne.s32.totalorder %s93, %s95
      %p102 = scmp.eq.s32.totalorder %s22, 1
      %p103 = por %p101, %p102
      %p104 = scmp.ne.s32.totalorder %s95, %s96
      %p105 = scmp.eq.s32.totalorder %s22, 0
      %p106 = por %p104, %p105
      %p107 = scmp.ne.s32.totalorder %s95, %s96
      %p108 = scmp.eq.s32.totalorder %s23, 1
      %p109 = por %p107, %p108
      %p111 = scmp.ne.s32.totalorder %s96, %s110
      %p112 = scmp.eq.s32.totalorder %s23, 0
      %p113 = por %p111, %p112
      %s114 = ssub.s32 %s17, %s24
      %p115 = scmp.eq.s32.totalorder %s114, 0
      %s117 = sadd.s32 %s116, 1
      %s118 = scalar_select %p115, %s116, %s117
      %p121 = pneg %p115
      %p122 = scmp.eq.s32.totalorder %s17, 1
      %p123 = por %p121, %p122
      %p124 = scmp.ne.s32.totalorder %s116, %s119
      %p125 = scmp.eq.s32.totalorder %s17, 0
      %p126 = por %p124, %p125
      %p127 = scmp.ne.s32.totalorder %s116, %s119
      %p128 = scmp.eq.s32.totalorder %s22, 1
      %p129 = por %p127, %p128
      %p130 = scmp.ne.s32.totalorder %s119, %s120
      %p131 = scmp.eq.s32.totalorder %s22, 0
      %p132 = por %p130, %p131
      %p133 = scmp.ne.s32.totalorder %s119, %s120
      %p134 = scmp.eq.s32.totalorder %s23, 1
      %p135 = por %p133, %p134
      %p137 = scmp.ne.s32.totalorder %s120, %s136
      %p138 = scmp.eq.s32.totalorder %s23, 0
      %p139 = por %p137, %p138
      %p140 = scmp.le.s32.totalorder 1, %s17
      %p141 = scmp.lt.s32.totalorder %s17, 3
      %p142 = pnand %p140, %p141
      %p143 = pneg %p142
      // Predicated region
      $region9: #{tpu_custom_call.1} parent=5 // pred_check
        _
      $region10: #{tpu_custom_call.1} parent=5 // pred_check_branch
        %145 = sbr.rel (%p142) target = $region12
      $region11: #{tpu_custom_call.1} parent=5 // pred_region
        %s146 = ssub.s32 %s17, 1
        // Predicated region
        $region13: #{tpu_custom_call.1} parent=11 // pred_check
          %p147 = pneg %p64
        $region14: #{tpu_custom_call.1} parent=11 // pred_check_branch
          %149 = sbr.rel (%p147) target = $region16
        $region15: #{tpu_custom_call.1} parent=11 // pred_region
          %s151 = ssub.s32 2048, 2048
          %152 = vsyncadd [#allocation6], %s151
          %s153 = sshll.u32 [#allocation5], 4
          %s154 = int_to_ptr.vmem [resolvable:$true] %s153
          %159 = dma.hbm_to_vmem [thread:$0]  %s1, 2048, %s154, [#allocation6], 128, 128, 8
        $region16: #{tpu_custom_call.1} parent=11 // pred_fallthru
          _
        // Predicated region
        $region17: #{tpu_custom_call.1} parent=11 // pred_check
          %p160 = pneg %p85
        $region18: #{tpu_custom_call.1} parent=11 // pred_check_branch
          %162 = sbr.rel (%p160) target = $region20
        $region19: #{tpu_custom_call.1} parent=11 // pred_region
          %s164 = ssub.s32 2048, 2048
          %165 = vsyncadd [#allocation6], %s164
          %s166 = sshll.u32 [#allocation7], 4
          %s167 = int_to_ptr.vmem [resolvable:$true] %s166
          %172 = dma.hbm_to_vmem [thread:$0]  %s2, 2048, %s167, [#allocation6], 128, 128, 8
        $region20: #{tpu_custom_call.1} parent=11 // pred_fallthru
          _
        // Predicated region
        $region21: #{tpu_custom_call.1} parent=11 // pred_check
          %p173 = pneg %p106
        $region22: #{tpu_custom_call.1} parent=11 // pred_check_branch
          %175 = sbr.rel (%p173) target = $region24
        $region23: #{tpu_custom_call.1} parent=11 // pred_region
          _
        $region24: #{tpu_custom_call.1} parent=11 // pred_fallthru
          _
      $region12: #{tpu_custom_call.1} parent=5 // pred_fallthru
        _
      %p176 = scmp.lt.s32.totalorder %s17, 2
      // Predicated region
      $region25: #{tpu_custom_call.1} parent=5 // pred_check
        %p177 = pneg %p176
      $region26: #{tpu_custom_call.1} parent=5 // pred_check_branch
        %179 = sbr.rel (%p177) target = $region28
      $region27: #{tpu_custom_call.1} parent=5 // pred_region
        // Predicated region
        $region29: #{tpu_custom_call.1} parent=27 // pred_check
          %p180 = pneg %p37
        $region30: #{tpu_custom_call.1} parent=27 // pred_check_branch
          %182 = sbr.rel (%p180) target = $region32
        $region31: #{tpu_custom_call.1} parent=27 // pred_region
          %s183 = sand.u32 %s27, 1
          %s184 = scalar_lea.sflag [#allocation3], %s183
          %s185 = sand.u32 %s27, 1
          %s186 = smul.addr %s185, 64
          %s187 = scalar_lea.vmem [#allocation2], %s186
          %s188 = smul.u32 8, %s17
          %s190 = ssub.s32 1024, 1024
          %191 = vsyncadd %s184, %s190
          %s192 = smul.addr %s188, 128
          %s193 = scalar_lea.hbm %s0, %s192
          %s194 = sshll.u32 %s187, 4
          %s195 = int_to_ptr.vmem [resolvable:$true] %s194
          %200 = dma.hbm_to_vmem [thread:$0]  %s193, 1024, %s195, %s184, 128, 128, 8
        $region32: #{tpu_custom_call.1} parent=27 // pred_fallthru
          _
      $region28: #{tpu_custom_call.1} parent=5 // pred_fallthru
        _
      %p201 = scmp.le.s32.totalorder 1, %s17
      %p202 = scmp.lt.s32.totalorder %s17, 3
      %p203 = pnand %p201, %p202
      %p204 = pneg %p203
      // Predicated region
      $region33: #{tpu_custom_call.1} parent=5 // pred_check
        _
      $region34: #{tpu_custom_call.1} parent=5 // pred_check_branch
        %206 = sbr.rel (%p203) target = $region36
      $region35: #{tpu_custom_call.1} parent=5 // pred_region
        %s207 = ssub.s32 %s17, 1
        %s208 = sand.u32 %s30, 1
        %s209 = scalar_lea.sflag [#allocation3], %s208
        %s210 = sand.u32 %s30, 1
        %s211 = smul.addr %s210, 64
        %s212 = scalar_lea.vmem [#allocation2], %s211
        // Predicated region
        $region37: #{tpu_custom_call.1} parent=35 // pred_check
          %p213 = pneg %p43
        $region38: #{tpu_custom_call.1} parent=35 // pred_check_branch
          %215 = sbr.rel (%p213) target = $region40
        $region39: #{tpu_custom_call.1} parent=35 // pred_region
          %216 = dma.done %s209, 1024
        $region40: #{tpu_custom_call.1} parent=35 // pred_fallthru
          _
        // Predicated region
        $region41: #{tpu_custom_call.1} parent=35 // pred_check
          %p217 = pneg %p64
        $region42: #{tpu_custom_call.1} parent=35 // pred_check_branch
          %219 = sbr.rel (%p217) target = $region44
        $region43: #{tpu_custom_call.1} parent=35 // pred_region
          %220 = dma.done [#allocation6], 2048
        $region44: #{tpu_custom_call.1} parent=35 // pred_fallthru
          _
        // Predicated region
        $region45: #{tpu_custom_call.1} parent=35 // pred_check
          %p221 = pneg %p85
        $region46: #{tpu_custom_call.1} parent=35 // pred_check_branch
          %223 = sbr.rel (%p221) target = $region48
        $region47: #{tpu_custom_call.1} parent=35 // pred_region
          %224 = dma.done [#allocation6], 2048
        $region48: #{tpu_custom_call.1} parent=35 // pred_fallthru
          _
        %s225 = sand.u32 %s30, 1
        %s226 = scalar_lea.sflag [#allocation3], %s225
        %s227 = sand.u32 %s30, 1
        %s228 = smul.addr %s227, 64
        %s229 = scalar_lea.vmem [#allocation2], %s228
        %p230 = pneg %p43
        %p231 = pneg %p40
        %p232 = pneg %p64
        %p233 = pneg %p61
        %p234 = pneg %p85
        %p235 = pneg %p82
        %p236 = pneg %p106
        %p237 = pneg %p103
        %p238 = pneg %p132
        %p239 = pneg %p129
        %s240 = sand.u32 %s119, 1
        %s241 = scalar_lea.sflag [#allocation4], %s240
        %s242 = sand.u32 %s119, 1
        %s243 = smul.addr %s242, 64
        %s244 = scalar_lea.vmem [#allocation8], %s243
        %s245 = smul.u32 8, %s22
        %s246 = smul.u32 8, %s22
        %v247 = vld [vmem:[%s212] sm:$0xff]
        %v248 = vld [vmem:[%s212 + $0x8] sm:$0xff]
        %v249 = vld [vmem:[%s212 + $0x10] sm:$0xff]
        %v250 = vld [vmem:[%s212 + $0x18] sm:$0xff]
        %v251 = vld [vmem:[%s212 + $0x20] sm:$0xff]
        %v252 = vld [vmem:[%s212 + $0x28] sm:$0xff]
        %v253 = vld [vmem:[%s212 + $0x30] sm:$0xff]
        %v254 = vld [vmem:[%s212 + $0x38] sm:$0xff]
        %v255 = vld [vmem:[#allocation5] sm:$0xff]
        %v256 = vld [vmem:[#allocation5 + $0x8] sm:$0xff]
        %v257 = vld [vmem:[#allocation5 + $0x10] sm:$0xff]
        %v258 = vld [vmem:[#allocation5 + $0x18] sm:$0xff]
        %v259 = vld [vmem:[#allocation5 + $0x20] sm:$0xff]
        %v260 = vld [vmem:[#allocation5 + $0x28] sm:$0xff]
        %v261 = vld [vmem:[#allocation5 + $0x30] sm:$0xff]
        %v262 = vld [vmem:[#allocation5 + $0x38] sm:$0xff]
        %v263 = vld [vmem:[#allocation5 + $0x40] sm:$0xff]
        %v264 = vld [vmem:[#allocation5 + $0x48] sm:$0xff]
        %v265 = vld [vmem:[#allocation5 + $0x50] sm:$0xff]
        %v266 = vld [vmem:[#allocation5 + $0x58] sm:$0xff]
        %v267 = vld [vmem:[#allocation5 + $0x60] sm:$0xff]
        %v268 = vld [vmem:[#allocation5 + $0x68] sm:$0xff]
        %v269 = vld [vmem:[#allocation5 + $0x70] sm:$0xff]
        %v270 = vld [vmem:[#allocation5 + $0x78] sm:$0xff]
        %271 = vmatprep.subr.mxu0 0.0
        %272 = vmatpush1.msra.mxu0 %v255
        %273 = vmatprep.subr.mxu0 0.0
        %274 = vmatpush1.msra.mxu0 %v256
        %275 = vmatprep.subr.mxu0 0.0
        %276 = vmatpush1.msra.mxu0 %v257
        %277 = vmatprep.subr.mxu0 0.0
        %278 = vmatpush1.msra.mxu0 %v258
        %279 = vmatprep.subr.mxu0 0.0
        %280 = vmatpush1.msra.mxu0 %v259
        %281 = vmatprep.subr.mxu0 0.0
        %282 = vmatpush1.msra.mxu0 %v260
        %283 = vmatprep.subr.mxu0 0.0
        %284 = vmatpush1.msra.mxu0 %v261
        %285 = vmatprep.subr.mxu0 0.0
        %286 = vmatpush1.msra.mxu0 %v262
        %287 = vmatprep.subr.mxu0 0.0
        %288 = vmatpush1.msra.mxu0 %v263
        %289 = vmatprep.subr.mxu0 0.0
        %290 = vmatpush1.msra.mxu0 %v264
        %291 = vmatprep.subr.mxu0 0.0
        %292 = vmatpush1.msra.mxu0 %v265
        %293 = vmatprep.subr.mxu0 0.0
        %294 = vmatpush1.msra.mxu0 %v266
        %295 = vmatprep.subr.mxu0 0.0
        %296 = vmatpush1.msra.mxu0 %v267
        %297 = vmatprep.subr.mxu0 0.0
        %298 = vmatpush1.msra.mxu0 %v268
        %299 = vmatprep.subr.mxu0 0.0
        %300 = vmatpush1.msra.mxu0 %v269
        %301 = vmatprep.subr.mxu0 0.0
        %302 = vmatpush1.msra.mxu0 %v270
        %303 = vmatprep.subr.mxu0 0.0
        %304 = vmatpush1.msra.mxu0 0.0
        %305 = vmatprep.subr.mxu0 0.0
        %306 = vmatpush1.msra.mxu0 0.0
        %307 = vmatprep.subr.mxu0 0.0
        %308 = vmatpush1.msra.mxu0 0.0
        %309 = vmatprep.subr.mxu0 0.0
        %310 = vmatpush1.msra.mxu0 0.0
        %311 = vmatprep.subr.mxu0 0.0
        %312 = vmatpush1.msra.mxu0 0.0
        %313 = vmatprep.subr.mxu0 0.0
        %314 = vmatpush1.msra.mxu0 0.0
        %315 = vmatprep.subr.mxu0 0.0
        %316 = vmatpush1.msra.mxu0 0.0
        %317 = vmatprep.subr.mxu0 0.0
        %318 = vmatpush1.msra.mxu0 0.0
        %319 = vmatprep.subr.mxu0 0.0
        %320 = vmatpush1.msra.mxu0 0.0
        %321 = vmatprep.subr.mxu0 0.0
        %322 = vmatpush1.msra.mxu0 0.0
        %323 = vmatprep.subr.mxu0 0.0
        %324 = vmatpush1.msra.mxu0 0.0
        %325 = vmatprep.subr.mxu0 0.0
        %326 = vmatpush1.msra.mxu0 0.0
        %327 = vmatprep.subr.mxu0 0.0
        %328 = vmatpush1.msra.mxu0 0.0
        %329 = vmatprep.subr.mxu0 0.0
        %330 = vmatpush1.msra.mxu0 0.0
        %331 = vmatprep.subr.mxu0 0.0
        %332 = vmatpush1.msra.mxu0 0.0
        %333 = vmatprep.subr.mxu0 0.0
        %334 = vmatpush1.msra.mxu0 0.0
        %335 = vmatprep.mubr.f32.mxu0 0.0
        %336 = vmatmul.mubr.f32.gmra.mrb[0].mxu0 %v247
        %v337 = vpop.f32.mrb[0].mxu0
        %v338 = vadd.f32 0.0, %v337
        %v339 = vpop.f32.mrb[0].mxu0
        %340 = vmatprep.mubr.f32.mxu0 0.0
        %341 = vmatmul.mubr.f32.gmra.mrb[0].mxu0 %v248
        %v342 = vpop.f32.mrb[0].mxu0
        %v343 = vadd.f32 0.0, %v342
        %v344 = vpop.f32.mrb[0].mxu0
        %345 = vmatprep.mubr.f32.mxu0 0.0
        %346 = vmatmul.mubr.f32.gmra.mrb[0].mxu0 %v249
        %v347 = vpop.f32.mrb[0].mxu0
        %v348 = vadd.f32 0.0, %v347
        %v349 = vpop.f32.mrb[0].mxu0
        %350 = vmatprep.mubr.f32.mxu0 0.0
        %351 = vmatmul.mubr.f32.gmra.mrb[0].mxu0 %v250
        %v352 = vpop.f32.mrb[0].mxu0
        %v353 = vadd.f32 0.0, %v352
        %v354 = vpop.f32.mrb[0].mxu0
        %355 = vmatprep.mubr.f32.mxu0 0.0
        %356 = vmatmul.mubr.f32.gmra.mrb[0].mxu0 %v251
        %v357 = vpop.f32.mrb[0].mxu0
        %v358 = vadd.f32 0.0, %v357
        %v359 = vpop.f32.mrb[0].mxu0
        %360 = vmatprep.mubr.f32.mxu0 0.0
        %361 = vmatmul.mubr.f32.gmra.mrb[0].mxu0 %v252
        %v362 = vpop.f32.mrb[0].mxu0
        %v363 = vadd.f32 0.0, %v362
        %v364 = vpop.f32.mrb[0].mxu0
        %365 = vmatprep.mubr.f32.mxu0 0.0
        %366 = vmatmul.mubr.f32.gmra.mrb[0].mxu0 %v253
        %v367 = vpop.f32.mrb[0].mxu0
        %v368 = vadd.f32 0.0, %v367
        %v369 = vpop.f32.mrb[0].mxu0
        %370 = vmatprep.mubr.f32.mxu0 0.0
        %371 = vmatmul.mubr.f32.gmra.mrb[0].mxu0 %v254
        %v372 = vpop.f32.mrb[0].mxu0
        %v373 = vadd.f32 0.0, %v372
        %v374 = vpop.f32.mrb[0].mxu0
        %375 = vdwg.mxu0
        %v376 = vmax.f32 %v338, 0.0
        %v377 = vmax.f32 %v343, 0.0
        %v378 = vmax.f32 %v348, 0.0
        %v379 = vmax.f32 %v353, 0.0
        %v380 = vmax.f32 %v358, 0.0
        %v381 = vmax.f32 %v363, 0.0
        %v382 = vmax.f32 %v368, 0.0
        %v383 = vmax.f32 %v373, 0.0
        %v384 = vld [vmem:[#allocation7] sm:$0xff]
        %v385 = vld [vmem:[#allocation7 + $0x8] sm:$0xff]
        %v386 = vld [vmem:[#allocation7 + $0x10] sm:$0xff]
        %v387 = vld [vmem:[#allocation7 + $0x18] sm:$0xff]
        %v388 = vld [vmem:[#allocation7 + $0x20] sm:$0xff]
        %v389 = vld [vmem:[#allocation7 + $0x28] sm:$0xff]
        %v390 = vld [vmem:[#allocation7 + $0x30] sm:$0xff]
        %v391 = vld [vmem:[#allocation7 + $0x38] sm:$0xff]
        %v392 = vld [vmem:[#allocation7 + $0x40] sm:$0xff]
        %v393 = vld [vmem:[#allocation7 + $0x48] sm:$0xff]
        %v394 = vld [vmem:[#allocation7 + $0x50] sm:$0xff]
        %v395 = vld [vmem:[#allocation7 + $0x58] sm:$0xff]
        %v396 = vld [vmem:[#allocation7 + $0x60] sm:$0xff]
        %v397 = vld [vmem:[#allocation7 + $0x68] sm:$0xff]
        %v398 = vld [vmem:[#allocation7 + $0x70] sm:$0xff]
        %v399 = vld [vmem:[#allocation7 + $0x78] sm:$0xff]
        %v400 = vld [vmem:[%s3] sm:$0x1]
        %v402 = vlaneseq
        %v403 = vshrl.u32 %v402, 7
        %v404 = vsub.s32 0, %v403
        %v405 = vrot.slane %v400, %v404
        %407 = vmatprep.subr.mxu0 0.0
        %408 = vmatpush1.msra.mxu0 %v384
        %409 = vmatprep.subr.mxu0 0.0
        %410 = vmatpush1.msra.mxu0 %v385
        %411 = vmatprep.subr.mxu0 0.0
        %412 = vmatpush1.msra.mxu0 %v386
        %413 = vmatprep.subr.mxu0 0.0
        %414 = vmatpush1.msra.mxu0 %v387
        %415 = vmatprep.subr.mxu0 0.0
        %416 = vmatpush1.msra.mxu0 %v388
        %417 = vmatprep.subr.mxu0 0.0
        %418 = vmatpush1.msra.mxu0 %v389
        %419 = vmatprep.subr.mxu0 0.0
        %420 = vmatpush1.msra.mxu0 %v390
        %421 = vmatprep.subr.mxu0 0.0
        %422 = vmatpush1.msra.mxu0 %v391
        %423 = vmatprep.subr.mxu0 0.0
        %424 = vmatpush1.msra.mxu0 %v392
        %425 = vmatprep.subr.mxu0 0.0
        %426 = vmatpush1.msra.mxu0 %v393
        %427 = vmatprep.subr.mxu0 0.0
        %428 = vmatpush1.msra.mxu0 %v394
        %429 = vmatprep.subr.mxu0 0.0
        %430 = vmatpush1.msra.mxu0 %v395
        %431 = vmatprep.subr.mxu0 0.0
        %432 = vmatpush1.msra.mxu0 %v396
        %433 = vmatprep.subr.mxu0 0.0
        %434 = vmatpush1.msra.mxu0 %v397
        %435 = vmatprep.subr.mxu0 0.0
        %436 = vmatpush1.msra.mxu0 %v398
        %437 = vmatprep.subr.mxu0 0.0
        %438 = vmatpush1.msra.mxu0 %v399
        %439 = vmatprep.subr.mxu0 0.0
        %440 = vmatpush1.msra.mxu0 0.0
        %441 = vmatprep.subr.mxu0 0.0
        %442 = vmatpush1.msra.mxu0 0.0
        %443 = vmatprep.subr.mxu0 0.0
        %444 = vmatpush1.msra.mxu0 0.0
        %445 = vmatprep.subr.mxu0 0.0
        %446 = vmatpush1.msra.mxu0 0.0
        %447 = vmatprep.subr.mxu0 0.0
        %448 = vmatpush1.msra.mxu0 0.0
        %449 = vmatprep.subr.mxu0 0.0
        %450 = vmatpush1.msra.mxu0 0.0
        %451 = vmatprep.subr.mxu0 0.0
        %452 = vmatpush1.msra.mxu0 0.0
        %453 = vmatprep.subr.mxu0 0.0
        %454 = vmatpush1.msra.mxu0 0.0
        %455 = vmatprep.subr.mxu0 0.0
        %456 = vmatpush1.msra.mxu0 0.0
        %457 = vmatprep.subr.mxu0 0.0
        %458 = vmatpush1.msra.mxu0 0.0
        %459 = vmatprep.subr.mxu0 0.0
        %460 = vmatpush1.msra.mxu0 0.0
        %461 = vmatprep.subr.mxu0 0.0
        %462 = vmatpush1.msra.mxu0 0.0
        %463 = vmatprep.subr.mxu0 0.0
        %464 = vmatpush1.msra.mxu0 0.0
        %465 = vmatprep.subr.mxu0 0.0
        %466 = vmatpush1.msra.mxu0 0.0
        %467 = vmatprep.subr.mxu0 0.0
        %468 = vmatpush1.msra.mxu0 0.0
        %469 = vmatprep.subr.mxu0 0.0
        %470 = vmatpush1.msra.mxu0 0.0
        %471 = vmatprep.mubr.f32.mxu0 0.0
        %472 = vmatmul.mubr.f32.gmra.mrb[0].mxu0 %v376
        %v473 = vpop.f32.mrb[0].mxu0
        %v474 = vadd.f32 %v405, %v473
        %v475 = vpop.f32.mrb[0].mxu0
        %476 = vmatprep.mubr.f32.mxu0 0.0
        %477 = vmatmul.mubr.f32.gmra.mrb[0].mxu0 %v377
        %v478 = vpop.f32.mrb[0].mxu0
        %v479 = vadd.f32 %v405, %v478
        %v480 = vpop.f32.mrb[0].mxu0
        %481 = vmatprep.mubr.f32.mxu0 0.0
        %482 = vmatmul.mubr.f32.gmra.mrb[0].mxu0 %v378
        %v483 = vpop.f32.mrb[0].mxu0
        %v484 = vadd.f32 %v405, %v483
        %v485 = vpop.f32.mrb[0].mxu0
        %486 = vmatprep.mubr.f32.mxu0 0.0
        %487 = vmatmul.mubr.f32.gmra.mrb[0].mxu0 %v379
        %v488 = vpop.f32.mrb[0].mxu0
        %v489 = vadd.f32 %v405, %v488
        %v490 = vpop.f32.mrb[0].mxu0
        %491 = vmatprep.mubr.f32.mxu0 0.0
        %492 = vmatmul.mubr.f32.gmra.mrb[0].mxu0 %v380
        %v493 = vpop.f32.mrb[0].mxu0
        %v494 = vadd.f32 %v405, %v493
        %v495 = vpop.f32.mrb[0].mxu0
        %496 = vmatprep.mubr.f32.mxu0 0.0
        %497 = vmatmul.mubr.f32.gmra.mrb[0].mxu0 %v381
        %v498 = vpop.f32.mrb[0].mxu0
        %v499 = vadd.f32 %v405, %v498
        %v500 = vpop.f32.mrb[0].mxu0
        %501 = vmatprep.mubr.f32.mxu0 0.0
        %502 = vmatmul.mubr.f32.gmra.mrb[0].mxu0 %v382
        %v503 = vpop.f32.mrb[0].mxu0
        %v504 = vadd.f32 %v405, %v503
        %v505 = vpop.f32.mrb[0].mxu0
        %506 = vmatprep.mubr.f32.mxu0 0.0
        %507 = vmatmul.mubr.f32.gmra.mrb[0].mxu0 %v383
        %v508 = vpop.f32.mrb[0].mxu0
        %v509 = vadd.f32 %v405, %v508
        %v510 = vpop.f32.mrb[0].mxu0
        %511 = vdwg.mxu0
        %v512 = vlaneseq
        %v513 = vand.u32 %v512, 127
        %vm514 = vcmp.lt.s32.totalorder %v513, 12
        %vm515 = vcmp.ge.s32.totalorder %v513, 12
        %vm516 = vcmp.lt.s32.totalorder %v513, 28
        %vm517 = vmand %vm515, %vm516
        %vm518 = vcmp.ge.s32.totalorder %v513, 28
        %vm519 = vcmp.lt.s32.totalorder %v513, 32
        %vm520 = vmand %vm518, %vm519
        %vm521 = vcmp.ge.s32.totalorder %v513, 32
        %vm522 = vcmp.lt.s32.totalorder %v513, 44
        %vm523 = vmand %vm521, %vm522
        %v524 = vxor.u32 %v474, 2147483648
        %v525 = vxor.u32 %v479, 2147483648
        %v526 = vxor.u32 %v484, 2147483648
        %v527 = vxor.u32 %v489, 2147483648
        %v528 = vxor.u32 %v494, 2147483648
        %v529 = vxor.u32 %v499, 2147483648
        %v530 = vxor.u32 %v504, 2147483648
        %v531 = vxor.u32 %v509, 2147483648
        %v532 = vmul.f32 %v524, 1.442695
        %v533 = vpow.pop %v532
        %v534 = vmul.f32 %v525, 1.442695
        %v535 = vpow.pop %v534
        %v536 = vmul.f32 %v526, 1.442695
        %v537 = vpow.pop %v536
        %v538 = vmul.f32 %v527, 1.442695
        %v539 = vpow.pop %v538
        %v540 = vmul.f32 %v528, 1.442695
        %v541 = vpow.pop %v540
        %v542 = vmul.f32 %v529, 1.442695
        %v543 = vpow.pop %v542
        %v544 = vmul.f32 %v530, 1.442695
        %v545 = vpow.pop %v544
        %v546 = vmul.f32 %v531, 1.442695
        %v547 = vpow.pop %v546
        %v548 = vadd.f32 %v533, 1.0
        %v549 = vadd.f32 %v535, 1.0
        %v550 = vadd.f32 %v537, 1.0
        %v551 = vadd.f32 %v539, 1.0
        %v552 = vadd.f32 %v541, 1.0
        %v553 = vadd.f32 %v543, 1.0
        %v554 = vadd.f32 %v545, 1.0
        %v555 = vadd.f32 %v547, 1.0
        %v556 = vrcp.pop %v548
        %v557 = vmul.f32 1.0, %v556
        %v558 = vrcp.pop %v549
        %v559 = vmul.f32 1.0, %v558
        %v560 = vrcp.pop %v550
        %v561 = vmul.f32 1.0, %v560
        %v562 = vrcp.pop %v551
        %v563 = vmul.f32 1.0, %v562
        %v564 = vrcp.pop %v552
        %v565 = vmul.f32 1.0, %v564
        %v566 = vrcp.pop %v553
        %v567 = vmul.f32 1.0, %v566
        %v568 = vrcp.pop %v554
        %v569 = vmul.f32 1.0, %v568
        %v570 = vrcp.pop %v555
        %v571 = vmul.f32 1.0, %v570
        %v572 = vsel %vm514, 1, 0
        %vm573 = vcmp.eq.s32.totalorder %v572, 1
        %v574 = vsel %vm573, %v247, 3.5449078
        %v575 = vsel %vm573, %v248, 3.5449078
        %v576 = vsel %vm573, %v249, 3.5449078
        %v577 = vsel %vm573, %v250, 3.5449078
        %v578 = vsel %vm573, %v251, 3.5449078
        %v579 = vsel %vm573, %v252, 3.5449078
        %v580 = vsel %vm573, %v253, 3.5449078
        %v581 = vsel %vm573, %v254, 3.5449078
        %v582 = vmul.f32 %v557, %v574
        %v583 = vmul.f32 %v559, %v575
        %v584 = vmul.f32 %v561, %v576
        %v585 = vmul.f32 %v563, %v577
        %v586 = vmul.f32 %v565, %v578
        %v587 = vmul.f32 %v567, %v579
        %v588 = vmul.f32 %v569, %v580
        %v589 = vmul.f32 %v571, %v581
        %v590 = vsel %vm514, 0.0, -1.7724539
        %v591 = vadd.f32 %v582, %v590
        %v592 = vadd.f32 %v583, %v590
        %v593 = vadd.f32 %v584, %v590
        %v594 = vadd.f32 %v585, %v590
        %v595 = vadd.f32 %v586, %v590
        %v596 = vadd.f32 %v587, %v590
        %v597 = vadd.f32 %v588, %v590
        %v598 = vadd.f32 %v589, %v590
        %v599 = vmul.f32 %v474, 1.442695
        %v600 = vpow.pop %v599
        %v601 = vmul.f32 %v479, 1.442695
        %v602 = vpow.pop %v601
        %v603 = vmul.f32 %v484, 1.442695
        %v604 = vpow.pop %v603
        %v605 = vmul.f32 %v489, 1.442695
        %v606 = vpow.pop %v605
        %v607 = vmul.f32 %v494, 1.442695
        %v608 = vpow.pop %v607
        %v609 = vmul.f32 %v499, 1.442695
        %v610 = vpow.pop %v609
        %v611 = vmul.f32 %v504, 1.442695
        %v612 = vpow.pop %v611
        %v613 = vmul.f32 %v509, 1.442695
        %v614 = vpow.pop %v613
        %v615 = vsub.f32 0.0, %v600
        %v616 = vsub.f32 0.0, %v602
        %v617 = vsub.f32 0.0, %v604
        %v618 = vsub.f32 0.0, %v606
        %v619 = vsub.f32 0.0, %v608
        %v620 = vsub.f32 0.0, %v610
        %v621 = vsub.f32 0.0, %v612
        %v622 = vsub.f32 0.0, %v614
        %v623 = vmul.f32 %v615, %v247
        %v624 = vmul.f32 %v616, %v248
        %v625 = vmul.f32 %v617, %v249
        %v626 = vmul.f32 %v618, %v250
        %v627 = vmul.f32 %v619, %v251
        %v628 = vmul.f32 %v620, %v252
        %v629 = vmul.f32 %v621, %v253
        %v630 = vmul.f32 %v622, %v254
        %v631 = vmul.f32 %v623, 1.442695
        %v632 = vpow.pop %v631
        %v633 = vmul.f32 %v624, 1.442695
        %v634 = vpow.pop %v633
        %v635 = vmul.f32 %v625, 1.442695
        %v636 = vpow.pop %v635
        %v637 = vmul.f32 %v626, 1.442695
        %v638 = vpow.pop %v637
        %v639 = vmul.f32 %v627, 1.442695
        %v640 = vpow.pop %v639
        %v641 = vmul.f32 %v628, 1.442695
        %v642 = vpow.pop %v641
        %v643 = vmul.f32 %v629, 1.442695
        %v644 = vpow.pop %v643
        %v645 = vmul.f32 %v630, 1.442695
        %v646 = vpow.pop %v645
        %v647 = vsub.f32 1.0, %v632
        %v648 = vsub.f32 1.0, %v634
        %v649 = vsub.f32 1.0, %v636
        %v650 = vsub.f32 1.0, %v638
        %v651 = vsub.f32 1.0, %v640
        %v652 = vsub.f32 1.0, %v642
        %v653 = vsub.f32 1.0, %v644
        %v654 = vsub.f32 1.0, %v646
        %vm655 = vmor %vm514, %vm523
        %v656 = vsel %vm517, 1, 0
        %vm657 = vcmp.eq.s32.totalorder %v656, 1
        %v658 = vsel %vm657, %v474, 0.0
        %v659 = vsel %vm657, %v479, 0.0
        %v660 = vsel %vm657, %v484, 0.0
        %v661 = vsel %vm657, %v489, 0.0
        %v662 = vsel %vm657, %v494, 0.0
        %v663 = vsel %vm657, %v499, 0.0
        %v664 = vsel %vm657, %v504, 0.0
        %v665 = vsel %vm657, %v509, 0.0
        %v666 = vsel %vm520, 1, 0
        %vm667 = vcmp.eq.s32.totalorder %v666, 1
        %v668 = vsel %vm667, %v647, %v658
        %v669 = vsel %vm667, %v648, %v659
        %v670 = vsel %vm667, %v649, %v660
        %v671 = vsel %vm667, %v650, %v661
        %v672 = vsel %vm667, %v651, %v662
        %v673 = vsel %vm667, %v652, %v663
        %v674 = vsel %vm667, %v653, %v664
        %v675 = vsel %vm667, %v654, %v665
        %v676 = vsel %vm655, 1, 0
        %vm677 = vcmp.eq.s32.totalorder %v676, 1
        %v678 = vsel %vm677, %v591, %v668
        %v679 = vsel %vm677, %v592, %v669
        %v680 = vsel %vm677, %v593, %v670
        %v681 = vsel %vm677, %v594, %v671
        %v682 = vsel %vm677, %v595, %v672
        %v683 = vsel %vm677, %v596, %v673
        %v684 = vsel %vm677, %v597, %v674
        %v685 = vsel %vm677, %v598, %v675
        %686 = vst [vmem:[%s244] sm:$0xff] %v678
        %687 = vst [vmem:[%s244 + $0x8] sm:$0xff] %v679
        %688 = vst [vmem:[%s244 + $0x10] sm:$0xff] %v680
        %689 = vst [vmem:[%s244 + $0x18] sm:$0xff] %v681
        %690 = vst [vmem:[%s244 + $0x20] sm:$0xff] %v682
        %691 = vst [vmem:[%s244 + $0x28] sm:$0xff] %v683
        %692 = vst [vmem:[%s244 + $0x30] sm:$0xff] %v684
        %693 = vst [vmem:[%s244 + $0x38] sm:$0xff] %v685
        %s694 = sand.u32 %s119, 1
        %s695 = scalar_lea.sflag [#allocation4], %s694
        %s696 = sand.u32 %s119, 1
        %s697 = smul.addr %s696, 64
        %s698 = scalar_lea.vmem [#allocation8], %s697
        // Predicated region
        $region49: #{tpu_custom_call.1} parent=35 // pred_check
          %p699 = pneg %p129
        $region50: #{tpu_custom_call.1} parent=35 // pred_check_branch
          %701 = sbr.rel (%p699) target = $region52
        $region51: #{tpu_custom_call.1} parent=35 // pred_region
          %s702 = smul.u32 8, %s22
          %s704 = ssub.s32 1024, 1024
          %705 = vsyncadd %s695, %s704
          %s706 = smul.addr %s702, 128
          %s707 = scalar_lea.hbm %s4, %s706
          %s708 = sshll.u32 %s698, 4
          %s709 = int_to_ptr.vmem [resolvable:$true] %s708
          %714 = dma.vmem_to_hbm [thread:$0]  %s709, 1024, %s707, %s695, 128, 128, 8
        $region52: #{tpu_custom_call.1} parent=35 // pred_fallthru
          _
      $region36: #{tpu_custom_call.1} parent=5 // pred_fallthru
        _
      %p715 = scmp.le.s32.totalorder 2, %s17
      // Predicated region
      $region53: #{tpu_custom_call.1} parent=5 // pred_check
        %p716 = pneg %p715
      $region54: #{tpu_custom_call.1} parent=5 // pred_check_branch
        %718 = sbr.rel (%p716) target = $region56
      $region55: #{tpu_custom_call.1} parent=5 // pred_region
        %s719 = ssub.s32 %s17, 2
        // Predicated region
        $region57: #{tpu_custom_call.1} parent=55 // pred_check
          %p720 = pneg %p135
        $region58: #{tpu_custom_call.1} parent=55 // pred_check_branch
          %722 = sbr.rel (%p720) target = $region60
        $region59: #{tpu_custom_call.1} parent=55 // pred_region
          %s723 = sand.u32 %s120, 1
          %s724 = scalar_lea.sflag [#allocation4], %s723
          %s725 = sand.u32 %s120, 1
          %s726 = smul.addr %s725, 64
          %s727 = scalar_lea.vmem [#allocation8], %s726
          %728 = dma.done %s724, 1024
        $region60: #{tpu_custom_call.1} parent=55 // pred_fallthru
          _
      $region56: #{tpu_custom_call.1} parent=5 // pred_fallthru
        _
    $region6: #{tpu_custom_call.1} parent=1 // loop_footer
      %s21 = sadd.s32 1, %s17
    $region7: #{tpu_custom_call.1} parent=1 // loop_footer_branch
      %16 = sbr.rel target = $region3
    $region8: #{tpu_custom_call.1} parent=1 // loop_exit
      _
    %729 = vsyncpa [#allocation3], 1
    %s730 = scalar_lea.sflag [#allocation3], 1
    %731 = vsyncpa %s730, 1
    %732 = vsyncpa [#allocation6], 1
    %733 = vsyncpa [#allocation4], 1
    %s734 = scalar_lea.sflag [#allocation4], 1
    %735 = vsyncpa %s734, 1

</llo_original>
